<compile_context>
chip_gen: v7x
topology: tpu7x:2x2x1
jax: 0.10.0
libtpu: 0.0.40
codegen_flags: <defaults>
</compile_context>

<pallas_src>
import functools
import math

import jax
import jax.numpy as jnp
from jax import lax
from jax.experimental import pallas as pl
from jax.experimental.pallas import tpu as pltpu


def _round_up(x, m):
    return (x + m - 1) // m * m


@functools.lru_cache(maxsize=None)
def _roll_is_forward():
    """One-time (cached) probe of pltpu.roll's rotation convention.

    Returns True iff pltpu.roll(x, shift=s, axis=0)[i] == x[i - s] (jnp.roll convention).
    The causal shifts below are built to be correct under either convention.
    Wrapped in ensure_compile_time_eval so the probe stays eager even if the caller
    jits causual_block_forward.
    """
    def k(x_ref, o_ref):
        o_ref[...] = pltpu.roll(x_ref[...], shift=1, axis=0)

    with jax.ensure_compile_time_eval():
        x = jnp.arange(1, 8 * 128 + 1, dtype=jnp.float32).reshape(8, 128)
        y = pl.pallas_call(k, out_shape=jax.ShapeDtypeStruct((8, 128), jnp.float32))(x)
        return bool(jnp.array_equal(y, jnp.roll(x, 1, axis=0)))


def _make_fused_kernel(R, Lp, Cp, dilations):
    """R = rows per grid step (batch_block * Lp), Cp = channels padded to 128-multiple."""
    n_blocks = len(dilations)
    roll_fwd = _roll_is_forward()

    def kernel(x_ref, w1_ref, b1_ref, bn_s_ref, bn_t_ref, w2_ref, b2_ref, o_ref):
        x = x_ref[...]                                            # (R, Cp) f32
        # time index within each length-Lp sample; hoisted once, reused by every tap
        t_idx = lax.broadcasted_iota(jnp.int32, (R, Cp), 0) % Lp
        mask_cache = {}                                           # hoist/reuse edge masks

        def shifted(src, s):
            # src[t - s] within each sample, 0 where t < s (causal left zero-pad)
            if s == 0:
                return src
            if s >= Lp:
                return jnp.zeros_like(src)
            if s not in mask_cache:
                mask_cache[s] = t_idx >= s
            amt = s if roll_fwd else R - s
            return jnp.where(mask_cache[s], pltpu.roll(src, shift=amt, axis=0), 0.0)

        def causal_conv(src, w_stk, bias, d):
            # im2col: taps at t-2d, t-d, t -> one (R, 3*Cp) x (3*Cp, Cp) MXU matmul
            taps = jnp.concatenate(
                [shifted(src, (2 - k) * d).astype(jnp.bfloat16) for k in range(3)],
                axis=1)
            return jnp.dot(taps, w_stk, preferred_element_type=jnp.float32) + bias

        for blk in range(n_blocks):                               # all 3 blocks fused
            d = dilations[blk]
            h = causal_conv(x, w1_ref[blk], b1_ref[blk], d)       # CausualConv (dil=d)
            h = jnp.where(h >= 0.0, h, 0.2 * h)                   # LeakyReLU(0.2)
            h = h * bn_s_ref[blk] + bn_t_ref[blk]                 # BatchNorm1d (eval, folded)
            # Dropout -> identity (eval mode)
            h2 = causal_conv(h, w2_ref[blk], b2_ref[blk], 1)      # CausualConv (dil=1)
            h2 = jnp.where(h2 >= 0.0, h2, 0.2 * h2)               # LeakyReLU(0.2)
            # Dropout -> identity; residual
            x = x + h2

        o_ref[...] = x

    return kernel


def causual_block_forward(x_ncl, params, eps=1e-5):
    """Eval-mode forward of CausualBlock.  x_ncl: (N, C, L) as in PyTorch, returns (N, C, L)."""
    N, C, L = x_ncl.shape
    n_blocks = len(params)
    dilations = tuple(int(p["dilation"]) for p in params)
    Cp = _round_up(C, 128)                                        # lane-dense channel axis
    Lp = _round_up(L, 8)                                          # sublane-aligned seq axis

    # rows per grid step: >=128 (fill MXU M) and ~512 (amortize per-step overhead),
    # with a VMEM guard on the double-buffered in/out activation blocks.
    target_rows = 512
    B_blk = max(1, min(N, max(1, target_rows // Lp)))
    while B_blk > 1 and 4 * (B_blk * Lp) * Cp * 4 > (8 << 20):
        B_blk -= 1
    N_pad = _round_up(N, B_blk)
    R = B_blk * Lp

    # NLC layout, channels / seq / batch zero-padded, (N, L) flattened into rows
    x = jnp.transpose(x_ncl, (0, 2, 1)).astype(jnp.float32)       # (N, L, C)
    x = jnp.pad(x, ((0, N_pad - N), (0, Lp - L), (0, Cp - C)))
    x = x.reshape(N_pad * Lp, Cp)

    def prep_conv(w, b):
        # torch (C_out, C_in, K) -> im2col (K*Cp_in, Cp_out) in bf16 for the MXU
        wk = jnp.transpose(w, (2, 1, 0))                          # (K, C_in, C_out)
        wk = jnp.pad(wk, ((0, 0), (0, Cp - C), (0, Cp - C)))
        return wk.reshape(3 * Cp, Cp).astype(jnp.bfloat16), jnp.pad(b, (0, Cp - C))

    w1s, b1s, bss, bts, w2s, b2s = [], [], [], [], [], []
    for p in params:
        w1, b1 = prep_conv(p["w1"], p["b1"])
        w2, b2 = prep_conv(p["w2"], p["b2"])
        # fold eval-mode BatchNorm1d (running stats) into per-channel scale/shift
        scale = p["gamma"] * lax.rsqrt(p["running_var"] + eps)
        shift = p["beta"] - p["running_mean"] * scale
        w1s.append(w1); b1s.append(b1); w2s.append(w2); b2s.append(b2)
        bss.append(jnp.pad(scale, (0, Cp - C), constant_values=1.0))
        bts.append(jnp.pad(shift, (0, Cp - C)))

    w1_all = jnp.stack(w1s)                                       # (nb, 3*Cp, Cp) bf16
    w2_all = jnp.stack(w2s)                                       # (nb, 3*Cp, Cp) bf16
    b1_all = jnp.stack(b1s)[:, None, :]                           # (nb, 1, Cp)   f32
    b2_all = jnp.stack(b2s)[:, None, :]
    bs_all = jnp.stack(bss)[:, None, :]
    bt_all = jnp.stack(bts)[:, None, :]

    kernel = _make_fused_kernel(R, Lp, Cp, dilations)
    rep = lambda n: (0, 0, 0)                                     # weights resident across steps
    out = pl.pallas_call(
        kernel,
        out_shape=jax.ShapeDtypeStruct((N_pad * Lp, Cp), jnp.float32),
        grid_spec=pltpu.PrefetchScalarGridSpec(
            num_scalar_prefetch=0,
            grid=(N_pad // B_blk,),
            in_specs=[
                pl.BlockSpec((R, Cp), lambda n: (n, 0)),          # activations
                pl.BlockSpec((n_blocks, 3 * Cp, Cp), rep),        # W1 (all blocks)
                pl.BlockSpec((n_blocks, 1, Cp), rep),             # b1
                pl.BlockSpec((n_blocks, 1, Cp), rep),             # BN scale
                pl.BlockSpec((n_blocks, 1, Cp), rep),             # BN shift
                pl.BlockSpec((n_blocks, 3 * Cp, Cp), rep),        # W2 (all blocks)
                pl.BlockSpec((n_blocks, 1, Cp), rep),             # b2
            ],
            out_specs=pl.BlockSpec((R, Cp), lambda n: (n, 0)),
        ),
        compiler_params=pltpu.CompilerParams(
            # 'parallel' shards the batch-block axis on v7x (2 TCs); total VMEM use for
            # the demo shapes is ~2 MiB so the default scoped limit is fine everywhere.
            dimension_semantics=("parallel",)),
    )(x, w1_all, b1_all, bs_all, bt_all, w2_all, b2_all)

    out = out.reshape(N_pad, Lp, Cp)[:N, :L, :C]
    return jnp.transpose(out, (0, 2, 1))                          # -> (N, C, L)


# ---------------- deterministic parameter init (xavier_uniform, gain('linear')=1) -----
def init_params(key, hidden_dim, n_conv=3):
    params = []
    k = 3
    fan_in = hidden_dim * k
    fan_out = hidden_dim * k
    xav = math.sqrt(6.0 / (fan_in + fan_out))
    bnd = 1.0 / math.sqrt(fan_in)                 # torch Conv1d default bias init
    for i in range(n_conv):
        key, k1, k2, k3, k4, k5, k6, k7, k8 = jax.random.split(key, 9)
        params.append(dict(
            dilation=3 ** i,
            w1=jax.random.uniform(k1, (hidden_dim, hidden_dim, k), jnp.float32, -xav, xav),
            b1=jax.random.uniform(k2, (hidden_dim,), jnp.float32, -bnd, bnd),
            gamma=jax.random.uniform(k3, (hidden_dim,), jnp.float32, 0.5, 1.5),
            beta=0.1 * jax.random.normal(k4, (hidden_dim,), jnp.float32),
            running_mean=0.1 * jax.random.normal(k5, (hidden_dim,), jnp.float32),
            running_var=jax.random.uniform(k6, (hidden_dim,), jnp.float32, 0.5, 1.5),
            w2=jax.random.uniform(k7, (hidden_dim, hidden_dim, k), jnp.float32, -xav, xav),
            b2=jax.random.uniform(k8, (hidden_dim,), jnp.float32, -bnd, bnd),
        ))
    return params


# ---------------- pure-JAX (f32) reference of the PyTorch eval-mode forward -----------
def ref_forward(x_ncl, params, eps=1e-5):
    x = x_ncl.astype(jnp.float32)
    dn = ("NCH", "OIH", "NCH")
    for p in params:
        res = x
        d = p["dilation"]
        pad = 2 * d
        h = lax.conv_general_dilated(x, p["w1"], (1,), [(pad, pad)],
                                     rhs_dilation=(d,), dimension_numbers=dn)
        h = (h + p["b1"][None, :, None])[:, :, :-pad]             # causal crop
        h = jnp.where(h >= 0.0, h, 0.2 * h)                       # LeakyReLU(0.2)
        scale = p["gamma"] / jnp.sqrt(p["running_var"] + eps)     # BatchNorm1d (eval)
        shift = p["beta"] - p["running_mean"] * scale
        h = h * scale[None, :, None] + shift[None, :, None]
        h2 = lax.conv_general_dilated(h, p["w2"], (1,), [(2, 2)],
                                      rhs_dilation=(1,), dimension_numbers=dn)
        h2 = (h2 + p["b2"][None, :, None])[:, :, :-2]
        h2 = jnp.where(h2 >= 0.0, h2, 0.2 * h2)
        x = h2 + res
    return x


if __name__ == "__main__":
    key = jax.random.PRNGKey(0)
    kx, kp = jax.random.split(key)

    N, C, L = 2, 32, 64              # batch=2, hidden_dim=32, sequence length 64
    x = jax.random.normal(kx, (N, C, L), jnp.float32)
    params = init_params(kp, C, n_conv=3)

    out = jax.block_until_ready(causual_block_forward(x, params))
    ref = jax.block_until_ready(ref_forward(x, params))

    assert out.shape == (N, C, L)
    # bf16 MXU operands vs pure-f32 reference -> loosened tolerance
    assert jnp.allclose(out, ref, atol=1e-1, rtol=5e-2), "mismatch vs JAX reference"

    print("KERNEL_OK")
</pallas_src>

<mosaic_0001>
module attributes {stable_mosaic.version = 11 : i64} {
  func.func @k(%arg0: memref<8x128xf32, #tpu.memory_space<vmem>>, %arg1: memref<8x128xf32, #tpu.memory_space<vmem>>) attributes {dimension_semantics = [], scalar_prefetch = 0 : i64, scratch_operands = 0 : i64, tpu.core_type = #tpu.core_type<tc>} {
    %c0 = arith.constant 0 : index
    %c0_0 = arith.constant 0 : index
    %0 = vector.load %arg0[%c0, %c0_0] : memref<8x128xf32, #tpu.memory_space<vmem>>, vector<8x128xf32>
    %c1_i32 = arith.constant 1 : i32
    %1 = tpu.dynamic_rotate %0 by %c1_i32 dim 0 : vector<8x128xf32>, i32 -> vector<8x128xf32>
    %c0_1 = arith.constant 0 : index
    %c0_2 = arith.constant 0 : index
    %2 = vector.load %arg1[%c0_1, %c0_2] : memref<8x128xf32, #tpu.memory_space<vmem>>, vector<8x128xf32>
    tpu.vector_store %arg1[%c0_1, %c0_2], %1 {strides = array<i32>} : memref<8x128xf32, #tpu.memory_space<vmem>>, vector<8x128xf32>,
    return
  }
}

</mosaic_0001>

<llo_original>
// kernel: tpu_custom_call.1
$region0: #{tpu_custom_call.1}
  #allocation0 [shape = 'u32[]', space=smem, size = 0x4, offset = 0x4, fixed_abs, tag = 'smem constant byte address 0x4 - core index']
  #allocation1 [shape = 'u32[144,128]{1,0:T(1,128)}', space=vmem, size = 0x12000, scoped, tag = 'internal scratch']
  %s0 = inlined_call_operand.hbm [shape: f32[8,128], index: 0, kind: input, shape index: {}]
  %s1 = inlined_call_operand.hbm [shape: f32[8,128], index: 1, kind: output, shape index: {}]
  %s2 = sld [smem:[#allocation0]]
  $region18: #{tpu_custom_call.1} parent=0
    _
  %s4 = ssub.s32 1, %s2
  %s5 = scalar_select 0, %s4, %s2
  $region1: #{tpu_custom_call.1} parent=0
    #allocation2 [shape = 'u8[4096]{0}', space=vmem, size = 0x1000, scoped, tag = 'input window, operand 0, single buffered']
    #allocation3 [shape = 's32[1]{0}', space=sflag, size = 0x4, scoped, tag = 'scoped memory for tpu_custom_call.1']
    #allocation4 [shape = 's32[1]{0}', space=sflag, size = 0x4, scoped, tag = 'scoped memory for tpu_custom_call.1']
    #allocation5 [shape = 'u8[4096]{0}', space=vmem, size = 0x1000, scoped, tag = 'output window, operand 0, single buffered']
    %6 = vsyncpa [#allocation3], 0
    %7 = vsyncpa [#allocation4], 0
    // Predicated region
    $region2: #{tpu_custom_call.1} parent=1 // pred_check
      _
    $region3: #{tpu_custom_call.1} parent=1 // pred_check_branch
      %9 = sbr.rel (0) target = $region5
    $region4: #{tpu_custom_call.1} parent=1 // pred_region
      %s11 = ssub.s32 128, 128
      %12 = vsyncadd [#allocation3], %s11
      %s14 = sshll.u32 [#allocation2], 4
      %s15 = int_to_ptr.vmem [resolvable:$true] %s14
      %17 = dma.hbm_to_vmem [thread:$0]  %s0, 128, %s15, [#allocation3]
    $region5: #{tpu_custom_call.1} parent=1 // pred_fallthru
      _
    // Predicated region
    $region6: #{tpu_custom_call.1} parent=1 // pred_check
      _
    $region7: #{tpu_custom_call.1} parent=1 // pred_check_branch
      %19 = sbr.rel (0) target = $region9
    $region8: #{tpu_custom_call.1} parent=1 // pred_region
      %20 = dma.done [#allocation3], 128
    $region9: #{tpu_custom_call.1} parent=1 // pred_fallthru
      _
    %v21 = vld [vmem:[#allocation2] sm:$0xff]
    %v22 = vrot.slane %v21, 7
    %23 = vst [vmem:[#allocation5] sm:$0xff] %v22
    // Predicated region
    $region10: #{tpu_custom_call.1} parent=1 // pred_check
      _
    $region11: #{tpu_custom_call.1} parent=1 // pred_check_branch
      %25 = sbr.rel (0) target = $region13
    $region12: #{tpu_custom_call.1} parent=1 // pred_region
      %s27 = ssub.s32 128, 128
      %28 = vsyncadd [#allocation4], %s27
      %s30 = sshll.u32 [#allocation5], 4
      %s31 = int_to_ptr.vmem [resolvable:$true] %s30
      %33 = dma.vmem_to_hbm [thread:$0]  %s31, 128, %s1, [#allocation4]
    $region13: #{tpu_custom_call.1} parent=1 // pred_fallthru
      _
    // Predicated region
    $region14: #{tpu_custom_call.1} parent=1 // pred_check
      _
    $region15: #{tpu_custom_call.1} parent=1 // pred_check_branch
      %35 = sbr.rel (0) target = $region17
    $region16: #{tpu_custom_call.1} parent=1 // pred_region
      %36 = dma.done [#allocation4], 128
    $region17: #{tpu_custom_call.1} parent=1 // pred_fallthru
      _
    %37 = vsyncpa [#allocation3], 1
    %38 = vsyncpa [#allocation4], 1

</llo_original>
